<compile_context>
chip_gen: v7x
topology: tpu7x:2x2x1
jax: 0.10.0
libtpu: 0.0.40
codegen_flags: <defaults>
</compile_context>

<pallas_src>
import jax
import jax.numpy as jnp
from jax.experimental import pallas as pl
from jax.experimental.pallas import tpu as pltpu

NEG_SLOPE = 0.01   # PyTorch nn.LeakyReLU default
LN_EPS = 1e-6


def _leaky_relu(v):
    return jnp.where(v >= 0, v, NEG_SLOPE * v)


def film_kernel(cat_ref, x_ref, table_ref, wf1_ref, bf1_ref, wf2_ref, bf2_ref, o_ref):
    x = x_ref[...].astype(jnp.float32)                 # (TB, H)
    TB, H = x.shape
    C, W = table_ref.shape                             # W = 3H + 2

    # ---- in-kernel gather of the per-category modulation row --------------------
    # Exact C-way masked select-sum (selects/multiplies by 1.0 or 0.0 only -> no
    # rounding).  C is tiny, so this is a handful of VPU ops; for large C switch to a
    # (TB, C) one-hot @ table MXU dot.
    cat = cat_ref[...]                                  # (TB, 1) int32
    mod = jnp.zeros((TB, W), jnp.float32)
    for c in range(C):                                  # static unroll, C is small
        row = table_ref[c:c + 1, :]                     # (1, W) f32
        mod = mod + jnp.where(cat == c, row, 0.0)

    g1p = mod[:, 0:H]                    # 1 + gamma1
    bb1 = mod[:, H:2 * H]                # beta1
    a1s = mod[:, 2 * H:3 * H]            # alpha2*(1+gamma2)*alpha1
    s = mod[:, 3 * H:3 * H + 1]          # alpha2*(1+gamma2)
    t = mod[:, 3 * H + 1:3 * H + 2]      # alpha2*beta2

    # ---- LayerNorm (no affine, eps=1e-6, biased variance — matches torch) -------
    mu = jnp.mean(x, axis=-1, keepdims=True)
    d = x - mu
    var = jnp.mean(d * d, axis=-1, keepdims=True)
    xn = d * jax.lax.rsqrt(var + LN_EPS)

    # ---- FiLM pre-modulation + feed_forward (f32 MXU accumulation) --------------
    y = xn * g1p + bb1
    y = jnp.dot(y.astype(wf1_ref.dtype), wf1_ref[...],
                preferred_element_type=jnp.float32) + bf1_ref[...]
    y = _leaky_relu(y)
    y = jnp.dot(y.astype(wf2_ref.dtype), wf2_ref[...],
                preferred_element_type=jnp.float32) + bf2_ref[...]

    # ---- residual + final FiLM modulation (alpha2/(1+gamma2)/beta2 pre-folded) --
    #   alpha2*((1+gamma2)*(x + alpha1*y) + beta2) == s*x + a1s*y + t
    o_ref[...] = (s * x + a1s * y + t).astype(o_ref.dtype)


def _pick_batch_tile(B, H, itemsize, cap):
    """Multiple-of-8 batch tile giving >= ~8 grid steps (megacore + pipelining) while
    keeping the per-step VMEM footprint within a conservative cross-generation budget."""
    if B <= 8:
        return B                                        # can't split below a sublane
    budget = 48 * 1024 * 1024                           # safe under v7x's 64 MiB VMEM
    # per-row: double-buffered x/out tiles + gathered modulation row + f32 temporaries
    per_row = 2 * 2 * H * itemsize + (3 * H + 2) * 4 + 6 * H * 4
    vmem_rows = max(8, budget // max(per_row, 1))
    tb = -(-B // 8)                                     # aim for >= 8 grid steps
    tb = ((tb + 7) // 8) * 8                            # sublane-aligned row count
    tb = int(min(tb, cap, vmem_rows, B))
    return max(8, (tb // 8) * 8)


def film_layer(x, category, params, num_categories, *,
               batch_tile=512, storage_dtype=jnp.bfloat16):
    """x: (B, H) float, category: (B,) int.  Returns (B, H) in `storage_dtype`."""
    B, H = x.shape
    (w1, b1, w2, b2, w3, b3, wf1, bf1, wf2, bf2) = params
    f32 = jnp.float32
    C = num_categories

    # ---- host/XLA-side precompute: the modulation MLP depends only on `category`,
    # so evaluate it for all C categories (one_hot(c) @ W + b == W[c] + b, exact) and
    # fold the final FiLM algebra into one small (C, 3H+2) table.
    h = _leaky_relu(w1.astype(f32) + b1.astype(f32))
    h = _leaky_relu(h @ w2.astype(f32) + b2.astype(f32))
    modall = h @ w3.astype(f32) + b3.astype(f32)        # (C, 3H+3)
    alpha1 = modall[:, 0:H]
    beta1 = modall[:, H:2 * H]
    gamma1 = modall[:, 2 * H:3 * H]
    alpha2 = modall[:, 3 * H:3 * H + 1]
    beta2 = modall[:, 3 * H + 1:3 * H + 2]
    gamma2 = modall[:, 3 * H + 2:3 * H + 3]
    s = alpha2 * (1.0 + gamma2)
    table = jnp.concatenate(
        [1.0 + gamma1, beta1, s * alpha1, s, alpha2 * beta2], axis=-1)  # (C, 3H+2) f32

    # ---- storage casts (bf16 by default: halves HBM traffic and weight VMEM) -----
    x_s = x.astype(storage_dtype)
    wf1_s = wf1.astype(storage_dtype)
    wf2_s = wf2.astype(storage_dtype)
    bf1_f = bf1.astype(f32)
    bf2_f = bf2.astype(f32)
    cat2d = category.astype(jnp.int32).reshape(B, 1)

    itemsize = jnp.dtype(storage_dtype).itemsize
    TB = _pick_batch_tile(B, H, itemsize, batch_tile)
    grid = (-(-B // TB),)

    # TODO(synk): for production H < 128 the (TB, H) tiles are lane-sparse (masked
    # vld/vst use H of 128 lanes); pack 128/H batch rows per lane-row with a segmented
    # LayerNorm (or pad H to 128) if profiles show the masked stores matter.
    def row_spec(feat):
        return pl.BlockSpec((TB, feat), lambda i: (i, 0))

    def const_spec(shape):
        nd = len(shape)
        # NOTE: for very large H, single-buffer these constants
        # (pipeline_mode=pl.Buffered(1)) to halve resident weight VMEM on v7x.
        return pl.BlockSpec(shape, lambda i, _nd=nd: (0,) * _nd)

    in_specs = [
        row_spec(1),                  # category (TB, 1) int32
        row_spec(H),                  # x
        const_spec(table.shape),      # folded modulation table (VMEM-resident)
        const_spec(wf1_s.shape), const_spec(bf1_f.shape),
        const_spec(wf2_s.shape), const_spec(bf2_f.shape),
    ]

    # Explicit VMEM budget (v7x: 64 MiB physical, 32 MiB scoped default).
    const_bytes = 2 * (table.size * 4
                       + (wf1_s.size + wf2_s.size) * itemsize
                       + (bf1_f.size + bf2_f.size) * 4)
    tile_bytes = 2 * TB * (2 * H * itemsize + 4) + TB * (3 * H + 2) * 4 + 6 * TB * H * 4
    vmem_limit = int(min(64 * 1024 * 1024,
                         max(32 * 1024 * 1024, 2 * (const_bytes + tile_bytes))))

    cost = pl.CostEstimate(
        flops=int(4 * B * H * H + 2 * B * C * (3 * H + 2) + 12 * B * H),
        transcendentals=int(B),                          # one rsqrt per row
        bytes_accessed=int(B * H * 2 * itemsize + B * 4 + table.size * 4
                           + (wf1_s.size + wf2_s.size) * itemsize
                           + (bf1_f.size + bf2_f.size) * 4),
    )

    return pl.pallas_call(
        film_kernel,
        out_shape=jax.ShapeDtypeStruct((B, H), storage_dtype),
        grid_spec=pltpu.PrefetchScalarGridSpec(
            num_scalar_prefetch=0,
            grid=grid,
            in_specs=in_specs,
            out_specs=row_spec(H),
        ),
        compiler_params=pltpu.CompilerParams(
            dimension_semantics=("parallel",),
            vmem_limit_bytes=vmem_limit,
        ),
        cost_estimate=cost,
    )(cat2d, x_s, table, wf1_s, bf1_f, wf2_s, bf2_f)


def init_params(key, num_categories, hidden_dim):
    """Deterministic synthetic parameters matching the module's __init__ shapes.

    Weights are stored transposed ((in, out)) so the math is x @ W; biases are (1, out)
    for 2-D TPU layout.  `out_projection` is unused in forward() and omitted.
    """
    mdim = 3 * hidden_dim + 3
    shapes = [
        (num_categories, mdim), (1, mdim),          # FiLM_modulation[0]
        (mdim, mdim), (1, mdim),                    # FiLM_modulation[2]
        (mdim, mdim), (1, mdim),                    # FiLM_modulation[4]
        (hidden_dim, hidden_dim), (1, hidden_dim),  # feed_forward[0]
        (hidden_dim, hidden_dim), (1, hidden_dim),  # feed_forward[2]
    ]
    keys = jax.random.split(key, len(shapes))
    params = []
    for k, sh in zip(keys, shapes):
        fan_in = sh[0] if sh[0] != 1 else sh[1]
        scale = 1.0 / jnp.sqrt(jnp.float32(fan_in))
        params.append(jax.random.uniform(k, sh, jnp.float32, -scale, scale))
    return tuple(params)


def film_reference(x, category, params, num_categories):
    """Pure-JAX reference matching the PyTorch forward pass (float32)."""
    (w1, b1, w2, b2, w3, b3, wf1, bf1, wf2, bf2) = params
    H = x.shape[-1]
    oh = jax.nn.one_hot(category, num_categories, dtype=jnp.float32)
    h = _leaky_relu(oh @ w1 + b1)
    h = _leaky_relu(h @ w2 + b2)
    mod = h @ w3 + b3
    alpha1, beta1, gamma1, alpha2, beta2, gamma2 = (
        mod[:, :H], mod[:, H:2 * H], mod[:, 2 * H:3 * H],
        mod[:, 3 * H:3 * H + 1], mod[:, 3 * H + 1:3 * H + 2], mod[:, 3 * H + 2:3 * H + 3])
    mu = jnp.mean(x, axis=-1, keepdims=True)
    var = jnp.mean((x - mu) ** 2, axis=-1, keepdims=True)
    xn = (x - mu) * jax.lax.rsqrt(var + LN_EPS)
    y = xn * (1.0 + gamma1) + beta1
    y = _leaky_relu(y @ wf1 + bf1)
    y = y @ wf2 + bf2
    x2 = x + alpha1 * y
    return alpha2 * ((1.0 + gamma2) * x2 + beta2)


if __name__ == "__main__":
    num_categories = 6
    hidden_dim = 32

    key = jax.random.PRNGKey(0)
    kx, kc, kp = jax.random.split(key, 3)
    params = init_params(kp, num_categories, hidden_dim)

    # --- small shape implied by the module: (batch, hidden_dim) features + (batch,) ids
    B0 = 8
    x0 = jax.random.normal(kx, (B0, hidden_dim), dtype=jnp.float32)
    c0 = jax.random.randint(kc, (B0,), 0, num_categories, dtype=jnp.int32)
    ref0 = film_reference(x0, c0, params, num_categories)

    # (1) f32 storage: strict parity with the PyTorch float32 forward.
    out_f32 = jax.block_until_ready(
        film_layer(x0, c0, params, num_categories, storage_dtype=jnp.float32))
    assert out_f32.shape == (B0, hidden_dim)
    assert jnp.allclose(out_f32, ref0, atol=1e-4, rtol=1e-4), "f32 kernel mismatch"

    # (2) bf16 storage (default perf path): bf16 I/O + weights, f32 accumulation.
    out_bf16 = jax.block_until_ready(film_layer(x0, c0, params, num_categories))
    assert out_bf16.dtype == jnp.bfloat16
    assert jnp.allclose(out_bf16.astype(jnp.float32), ref0, atol=5e-2, rtol=5e-2), \
        "bf16 kernel mismatch"

    # (3) multi-step grid: exercises batch tiling (TB=8, 7 steps) incl. a partial tile.
    B1 = 50
    kx1, kc1 = jax.random.split(jax.random.PRNGKey(1))
    x1 = jax.random.normal(kx1, (B1, hidden_dim), dtype=jnp.float32)
    c1 = jax.random.randint(kc1, (B1,), 0, num_categories, dtype=jnp.int32)
    out1 = jax.block_until_ready(
        film_layer(x1, c1, params, num_categories, storage_dtype=jnp.float32))
    ref1 = film_reference(x1, c1, params, num_categories)
    assert jnp.allclose(out1, ref1, atol=1e-4, rtol=1e-4), "tiled kernel mismatch"

    print("KERNEL_OK")
</pallas_src>

<mosaic_0001>
module attributes {stable_mosaic.version = 11 : i64} {
  func.func @film_kernel(%arg0: i32, %arg1: memref<8x1xi32, #tpu.memory_space<vmem>>, %arg2: memref<8x32xf32, #tpu.memory_space<vmem>>, %arg3: memref<6x98xf32, #tpu.memory_space<vmem>>, %arg4: memref<32x32xf32, #tpu.memory_space<vmem>>, %arg5: memref<1x32xf32, #tpu.memory_space<vmem>>, %arg6: memref<32x32xf32, #tpu.memory_space<vmem>>, %arg7: memref<1x32xf32, #tpu.memory_space<vmem>>, %arg8: memref<8x32xf32, #tpu.memory_space<vmem>>) attributes {dimension_semantics = [#tpu.dimension_semantics<parallel>], iteration_bounds = array<i64: 1>, scalar_prefetch = 0 : i64, scratch_operands = 0 : i64, tpu.core_type = #tpu.core_type<tc>, window_params = [{transform_indices = @transform_0, window_bounds = array<i64: 8, 1>}, {transform_indices = @transform_1, window_bounds = array<i64: 8, 32>}, {pipeline_mode = #tpu.pipeline_mode<synchronous>, transform_indices = @transform_2, window_bounds = array<i64: 6, 98>}, {pipeline_mode = #tpu.pipeline_mode<synchronous>, transform_indices = @transform_3, window_bounds = array<i64: 32, 32>}, {pipeline_mode = #tpu.pipeline_mode<synchronous>, transform_indices = @transform_4, window_bounds = array<i64: 1, 32>}, {pipeline_mode = #tpu.pipeline_mode<synchronous>, transform_indices = @transform_5, window_bounds = array<i64: 32, 32>}, {pipeline_mode = #tpu.pipeline_mode<synchronous>, transform_indices = @transform_6, window_bounds = array<i64: 1, 32>}, {transform_indices = @transform_7, window_bounds = array<i64: 8, 32>}]} {
    %c0 = arith.constant 0 : index
    %c0_0 = arith.constant 0 : index
    %0 = vector.load %arg2[%c0, %c0_0] : memref<8x32xf32, #tpu.memory_space<vmem>>, vector<8x32xf32>
    %c0_1 = arith.constant 0 : index
    %c0_2 = arith.constant 0 : index
    %1 = vector.load %arg1[%c0_1, %c0_2] : memref<8x1xi32, #tpu.memory_space<vmem>>, vector<8x1xi32>
    %cst = arith.constant 0.000000e+00 : f32
    %2 = vector.broadcast %cst : f32 to vector<8x98xf32>
    %c0_3 = arith.constant 0 : index
    %c0_4 = arith.constant 0 : index
    %3 = vector.load %arg3[%c0_3, %c0_4] : memref<6x98xf32, #tpu.memory_space<vmem>>, vector<1x98xf32>
    %c0_i32 = arith.constant 0 : i32
    %4 = vector.broadcast %c0_i32 : i32 to vector<8x1xi32>
    %5 = arith.cmpi eq, %1, %4 : vector<8x1xi32>
    %cst_5 = arith.constant 0.000000e+00 : f32
    %6 = vector.shape_cast %5 : vector<8x1xi1> to vector<8x1xi1>
    %7 = vector.broadcast %6 : vector<8x1xi1> to vector<8x98xi1>
    %8 = vector.shape_cast %3 : vector<1x98xf32> to vector<1x98xf32>
    %9 = vector.broadcast %8 : vector<1x98xf32> to vector<8x98xf32>
    %10 = vector.broadcast %cst_5 : f32 to vector<8x98xf32>
    %11 = arith.select %7, %9, %10 : vector<8x98xi1>, vector<8x98xf32>
    %12 = arith.addf %2, %11 : vector<8x98xf32>
    %c1 = arith.constant 1 : index
    %c0_6 = arith.constant 0 : index
    %13 = vector.load %arg3[%c1, %c0_6] : memref<6x98xf32, #tpu.memory_space<vmem>>, vector<1x98xf32>
    %c1_i32 = arith.constant 1 : i32
    %14 = vector.broadcast %c1_i32 : i32 to vector<8x1xi32>
    %15 = arith.cmpi eq, %1, %14 : vector<8x1xi32>
    %cst_7 = arith.constant 0.000000e+00 : f32
    %16 = vector.shape_cast %15 : vector<8x1xi1> to vector<8x1xi1>
    %17 = vector.broadcast %16 : vector<8x1xi1> to vector<8x98xi1>
    %18 = vector.shape_cast %13 : vector<1x98xf32> to vector<1x98xf32>
    %19 = vector.broadcast %18 : vector<1x98xf32> to vector<8x98xf32>
    %20 = vector.broadcast %cst_7 : f32 to vector<8x98xf32>
    %21 = arith.select %17, %19, %20 : vector<8x98xi1>, vector<8x98xf32>
    %22 = arith.addf %12, %21 : vector<8x98xf32>
    %c2 = arith.constant 2 : index
    %c0_8 = arith.constant 0 : index
    %23 = vector.load %arg3[%c2, %c0_8] : memref<6x98xf32, #tpu.memory_space<vmem>>, vector<1x98xf32>
    %c2_i32 = arith.constant 2 : i32
    %24 = vector.broadcast %c2_i32 : i32 to vector<8x1xi32>
    %25 = arith.cmpi eq, %1, %24 : vector<8x1xi32>
    %cst_9 = arith.constant 0.000000e+00 : f32
    %26 = vector.shape_cast %25 : vector<8x1xi1> to vector<8x1xi1>
    %27 = vector.broadcast %26 : vector<8x1xi1> to vector<8x98xi1>
    %28 = vector.shape_cast %23 : vector<1x98xf32> to vector<1x98xf32>
    %29 = vector.broadcast %28 : vector<1x98xf32> to vector<8x98xf32>
    %30 = vector.broadcast %cst_9 : f32 to vector<8x98xf32>
    %31 = arith.select %27, %29, %30 : vector<8x98xi1>, vector<8x98xf32>
    %32 = arith.addf %22, %31 : vector<8x98xf32>
    %c3 = arith.constant 3 : index
    %c0_10 = arith.constant 0 : index
    %33 = vector.load %arg3[%c3, %c0_10] : memref<6x98xf32, #tpu.memory_space<vmem>>, vector<1x98xf32>
    %c3_i32 = arith.constant 3 : i32
    %34 = vector.broadcast %c3_i32 : i32 to vector<8x1xi32>
    %35 = arith.cmpi eq, %1, %34 : vector<8x1xi32>
    %cst_11 = arith.constant 0.000000e+00 : f32
    %36 = vector.shape_cast %35 : vector<8x1xi1> to vector<8x1xi1>
    %37 = vector.broadcast %36 : vector<8x1xi1> to vector<8x98xi1>
    %38 = vector.shape_cast %33 : vector<1x98xf32> to vector<1x98xf32>
    %39 = vector.broadcast %38 : vector<1x98xf32> to vector<8x98xf32>
    %40 = vector.broadcast %cst_11 : f32 to vector<8x98xf32>
    %41 = arith.select %37, %39, %40 : vector<8x98xi1>, vector<8x98xf32>
    %42 = arith.addf %32, %41 : vector<8x98xf32>
    %c4 = arith.constant 4 : index
    %c0_12 = arith.constant 0 : index
    %43 = vector.load %arg3[%c4, %c0_12] : memref<6x98xf32, #tpu.memory_space<vmem>>, vector<1x98xf32>
    %c4_i32 = arith.constant 4 : i32
    %44 = vector.broadcast %c4_i32 : i32 to vector<8x1xi32>
    %45 = arith.cmpi eq, %1, %44 : vector<8x1xi32>
    %cst_13 = arith.constant 0.000000e+00 : f32
    %46 = vector.shape_cast %45 : vector<8x1xi1> to vector<8x1xi1>
    %47 = vector.broadcast %46 : vector<8x1xi1> to vector<8x98xi1>
    %48 = vector.shape_cast %43 : vector<1x98xf32> to vector<1x98xf32>
    %49 = vector.broadcast %48 : vector<1x98xf32> to vector<8x98xf32>
    %50 = vector.broadcast %cst_13 : f32 to vector<8x98xf32>
    %51 = arith.select %47, %49, %50 : vector<8x98xi1>, vector<8x98xf32>
    %52 = arith.addf %42, %51 : vector<8x98xf32>
    %c5 = arith.constant 5 : index
    %c0_14 = arith.constant 0 : index
    %53 = vector.load %arg3[%c5, %c0_14] : memref<6x98xf32, #tpu.memory_space<vmem>>, vector<1x98xf32>
    %c5_i32 = arith.constant 5 : i32
    %54 = vector.broadcast %c5_i32 : i32 to vector<8x1xi32>
    %55 = arith.cmpi eq, %1, %54 : vector<8x1xi32>
    %cst_15 = arith.constant 0.000000e+00 : f32
    %56 = vector.shape_cast %55 : vector<8x1xi1> to vector<8x1xi1>
    %57 = vector.broadcast %56 : vector<8x1xi1> to vector<8x98xi1>
    %58 = vector.shape_cast %53 : vector<1x98xf32> to vector<1x98xf32>
    %59 = vector.broadcast %58 : vector<1x98xf32> to vector<8x98xf32>
    %60 = vector.broadcast %cst_15 : f32 to vector<8x98xf32>
    %61 = arith.select %57, %59, %60 : vector<8x98xi1>, vector<8x98xf32>
    %62 = arith.addf %52, %61 : vector<8x98xf32>
    %63 = vector.extract_strided_slice %62 {offsets = [0, 0], sizes = [8, 32], strides = [1, 1]} : vector<8x98xf32> to vector<8x32xf32>
    %64 = vector.extract_strided_slice %62 {offsets = [0, 32], sizes = [8, 32], strides = [1, 1]} : vector<8x98xf32> to vector<8x32xf32>
    %65 = vector.extract_strided_slice %62 {offsets = [0, 64], sizes = [8, 32], strides = [1, 1]} : vector<8x98xf32> to vector<8x32xf32>
    %66 = vector.extract_strided_slice %62 {offsets = [0, 96], sizes = [8, 1], strides = [1, 1]} : vector<8x98xf32> to vector<8x1xf32>
    %67 = vector.extract_strided_slice %62 {offsets = [0, 97], sizes = [8, 1], strides = [1, 1]} : vector<8x98xf32> to vector<8x1xf32>
    %cst_16 = arith.constant dense<0.000000e+00> : vector<8xf32>
    %68 = vector.multi_reduction <add>, %0, %cst_16 [1] : vector<8x32xf32> to vector<8xf32>
    %69 = vector.shape_cast %68 : vector<8xf32> to vector<8x1xf32>
    %cst_17 = arith.constant 3.200000e+01 : f32
    %70 = vector.broadcast %cst_17 : f32 to vector<8x1xf32>
    %71 = arith.divf %69, %70 : vector<8x1xf32>
    %72 = vector.broadcast %71 : vector<8x1xf32> to vector<8x32xf32>
    %73 = arith.subf %0, %72 : vector<8x32xf32>
    %74 = arith.mulf %73, %73 : vector<8x32xf32>
    %cst_18 = arith.constant dense<0.000000e+00> : vector<8xf32>
    %75 = vector.multi_reduction <add>, %74, %cst_18 [1] : vector<8x32xf32> to vector<8xf32>
    %76 = vector.shape_cast %75 : vector<8xf32> to vector<8x1xf32>
    %cst_19 = arith.constant 3.200000e+01 : f32
    %77 = vector.broadcast %cst_19 : f32 to vector<8x1xf32>
    %78 = arith.divf %76, %77 : vector<8x1xf32>
    %cst_20 = arith.constant 9.99999997E-7 : f32
    %79 = vector.broadcast %cst_20 : f32 to vector<8x1xf32>
    %80 = arith.addf %78, %79 : vector<8x1xf32>
    %81 = math.rsqrt %80 : vector<8x1xf32>
    %82 = vector.broadcast %81 : vector<8x1xf32> to vector<8x32xf32>
    %83 = arith.mulf %73, %82 : vector<8x32xf32>
    %84 = arith.mulf %83, %63 : vector<8x32xf32>
    %85 = arith.addf %84, %64 : vector<8x32xf32>
    %c0_21 = arith.constant 0 : index
    %c0_22 = arith.constant 0 : index
    %86 = vector.load %arg4[%c0_21, %c0_22] : memref<32x32xf32, #tpu.memory_space<vmem>>, vector<32x32xf32>
    %cst_23 = arith.constant dense<0.000000e+00> : vector<8x32xf32>
    %87 = tpu.matmul %85, %86, %cst_23 {dimension_numbers = #tpu.dot_dimension_numbers<[1], [0], [0], [1], [0, 0, 1, 1], [], []>} : vector<8x32xf32>, vector<32x32xf32>, vector<8x32xf32> -> vector<8x32xf32>
    %c0_24 = arith.constant 0 : index
    %c0_25 = arith.constant 0 : index
    %88 = vector.load %arg5[%c0_24, %c0_25] : memref<1x32xf32, #tpu.memory_space<vmem>>, vector<1x32xf32>
    %89 = vector.broadcast %88 : vector<1x32xf32> to vector<8x32xf32>
    %90 = arith.addf %87, %89 : vector<8x32xf32>
    %cst_26 = arith.constant 0.000000e+00 : f32
    %91 = vector.broadcast %cst_26 : f32 to vector<8x32xf32>
    %92 = arith.cmpf oge, %90, %91 : vector<8x32xf32>
    %cst_27 = arith.constant 0.00999999977 : f32
    %93 = vector.broadcast %cst_27 : f32 to vector<8x32xf32>
    %94 = arith.mulf %93, %90 : vector<8x32xf32>
    %95 = arith.select %92, %90, %94 : vector<8x32xi1>, vector<8x32xf32>
    %c0_28 = arith.constant 0 : index
    %c0_29 = arith.constant 0 : index
    %96 = vector.load %arg6[%c0_28, %c0_29] : memref<32x32xf32, #tpu.memory_space<vmem>>, vector<32x32xf32>
    %cst_30 = arith.constant dense<0.000000e+00> : vector<8x32xf32>
    %97 = tpu.matmul %95, %96, %cst_30 {dimension_numbers = #tpu.dot_dimension_numbers<[1], [0], [0], [1], [0, 0, 1, 1], [], []>} : vector<8x32xf32>, vector<32x32xf32>, vector<8x32xf32> -> vector<8x32xf32>
    %c0_31 = arith.constant 0 : index
    %c0_32 = arith.constant 0 : index
    %98 = vector.load %arg7[%c0_31, %c0_32] : memref<1x32xf32, #tpu.memory_space<vmem>>, vector<1x32xf32>
    %99 = vector.broadcast %98 : vector<1x32xf32> to vector<8x32xf32>
    %100 = arith.addf %97, %99 : vector<8x32xf32>
    %101 = vector.broadcast %66 : vector<8x1xf32> to vector<8x32xf32>
    %102 = arith.mulf %101, %0 : vector<8x32xf32>
    %103 = arith.mulf %65, %100 : vector<8x32xf32>
    %104 = arith.addf %102, %103 : vector<8x32xf32>
    %105 = vector.broadcast %67 : vector<8x1xf32> to vector<8x32xf32>
    %106 = arith.addf %104, %105 : vector<8x32xf32>
    %c0_33 = arith.constant 0 : index
    %c0_34 = arith.constant 0 : index
    %107 = vector.load %arg8[%c0_33, %c0_34] : memref<8x32xf32, #tpu.memory_space<vmem>>, vector<8x32xf32>
    tpu.vector_store %arg8[%c0_33, %c0_34], %106 {strides = array<i32>} : memref<8x32xf32, #tpu.memory_space<vmem>>, vector<8x32xf32>,
    return
  }
  func.func @transform_0(%arg0: i32) -> (i32, i32) {
    %c0_i32 = arith.constant 0 : i32
    %c0_i32_0 = arith.constant 0 : i32
    return %arg0, %c0_i32 : i32, i32
  }
  func.func @transform_1(%arg0: i32) -> (i32, i32) {
    %c0_i32 = arith.constant 0 : i32
    %c0_i32_0 = arith.constant 0 : i32
    return %arg0, %c0_i32 : i32, i32
  }
  func.func @transform_2(%arg0: i32) -> (i32, i32) {
    %c0_i32 = arith.constant 0 : i32
    %c0_i32_0 = arith.constant 0 : i32
    %c0_i32_1 = arith.constant 0 : i32
    return %c0_i32, %c0_i32_0 : i32, i32
  }
  func.func @transform_3(%arg0: i32) -> (i32, i32) {
    %c0_i32 = arith.constant 0 : i32
    %c0_i32_0 = arith.constant 0 : i32
    %c0_i32_1 = arith.constant 0 : i32
    return %c0_i32, %c0_i32_0 : i32, i32
  }
  func.func @transform_4(%arg0: i32) -> (i32, i32) {
    %c0_i32 = arith.constant 0 : i32
    %c0_i32_0 = arith.constant 0 : i32
    %c0_i32_1 = arith.constant 0 : i32
    return %c0_i32, %c0_i32_0 : i32, i32
  }
  func.func @transform_5(%arg0: i32) -> (i32, i32) {
    %c0_i32 = arith.constant 0 : i32
    %c0_i32_0 = arith.constant 0 : i32
    %c0_i32_1 = arith.constant 0 : i32
    return %c0_i32, %c0_i32_0 : i32, i32
  }
  func.func @transform_6(%arg0: i32) -> (i32, i32) {
    %c0_i32 = arith.constant 0 : i32
    %c0_i32_0 = arith.constant 0 : i32
    %c0_i32_1 = arith.constant 0 : i32
    return %c0_i32, %c0_i32_0 : i32, i32
  }
  func.func @transform_7(%arg0: i32) -> (i32, i32) {
    %c0_i32 = arith.constant 0 : i32
    %c0_i32_0 = arith.constant 0 : i32
    return %arg0, %c0_i32 : i32, i32
  }
}

</mosaic_0001>

<llo_original>
// kernel: tpu_custom_call.1
$region0: #{tpu_custom_call.1}
  #allocation0 [shape = 'u32[]', space=smem, size = 0x4, offset = 0x4, fixed_abs, tag = 'smem constant byte address 0x4 - core index']
  #allocation1 [shape = 'u32[144,128]{1,0:T(1,128)}', space=vmem, size = 0x12000, scoped, tag = 'internal scratch']
  %s0 = inlined_call_operand.vmem [shape: s32[8,1], index: 0, kind: input, shape index: {}]
  %s1 = inlined_call_operand.vmem [shape: f32[8,32], index: 1, kind: input, shape index: {}]
  %s2 = inlined_call_operand.vmem [shape: f32[6,98], index: 2, kind: input, shape index: {}]
  %s3 = inlined_call_operand.hbm [shape: f32[32,32], index: 3, kind: input, shape index: {}]
  %s4 = inlined_call_operand.vmem [shape: f32[1,32], index: 4, kind: input, shape index: {}]
  %s5 = inlined_call_operand.hbm [shape: f32[32,32], index: 5, kind: input, shape index: {}]
  %s6 = inlined_call_operand.vmem [shape: f32[1,32], index: 6, kind: input, shape index: {}]
  %s7 = inlined_call_operand.hbm [shape: f32[8,32], index: 7, kind: output, shape index: {}]
  %s8 = sld [smem:[#allocation0]]
  $region46: #{tpu_custom_call.1} parent=0
    _
  %s10 = ssub.s32 1, %s8
  %s11 = scalar_select 0, %s10, %s8
  $region1: #{tpu_custom_call.1} parent=0
    #allocation2 [shape = 'u8[16384]{0}', space=vmem, size = 0x4000, scoped, tag = 'input window, operand 3, single buffered']
    #allocation3 [shape = 's32[1]{0}', space=sflag, size = 0x4, scoped, tag = 'scoped memory for tpu_custom_call.1']
    #allocation4 [shape = 's32[1]{0}', space=sflag, size = 0x4, scoped, tag = 'scoped memory for tpu_custom_call.1']
    #allocation5 [shape = 'u8[16384]{0}', space=vmem, size = 0x4000, scoped, tag = 'input window, operand 5, single buffered']
    #allocation6 [shape = 's32[1]{0}', space=sflag, size = 0x4, scoped, tag = 'scoped memory for tpu_custom_call.1']
    #allocation7 [shape = 'u8[4096]{0}', space=vmem, size = 0x1000, scoped, tag = 'output window, operand 0, single buffered']
    %12 = vsyncpa [#allocation3], 0
    %13 = vsyncpa [#allocation6], 0
    %14 = vsyncpa [#allocation4], 0
    // Predicated region
    $region2: #{tpu_custom_call.1} parent=1 // pred_check
      _
    $region3: #{tpu_custom_call.1} parent=1 // pred_check_branch
      %16 = sbr.rel (0) target = $region5
    $region4: #{tpu_custom_call.1} parent=1 // pred_region
      _
    $region5: #{tpu_custom_call.1} parent=1 // pred_fallthru
      _
    // Predicated region
    $region6: #{tpu_custom_call.1} parent=1 // pred_check
      _
    $region7: #{tpu_custom_call.1} parent=1 // pred_check_branch
      %18 = sbr.rel (0) target = $region9
    $region8: #{tpu_custom_call.1} parent=1 // pred_region
      _
    $region9: #{tpu_custom_call.1} parent=1 // pred_fallthru
      _
    // Predicated region
    $region10: #{tpu_custom_call.1} parent=1 // pred_check
      _
    $region11: #{tpu_custom_call.1} parent=1 // pred_check_branch
      %20 = sbr.rel (0) target = $region13
    $region12: #{tpu_custom_call.1} parent=1 // pred_region
      _
    $region13: #{tpu_custom_call.1} parent=1 // pred_fallthru
      _
    // Predicated region
    $region14: #{tpu_custom_call.1} parent=1 // pred_check
      _
    $region15: #{tpu_custom_call.1} parent=1 // pred_check_branch
      %22 = sbr.rel (0) target = $region17
    $region16: #{tpu_custom_call.1} parent=1 // pred_region
      %s24 = ssub.s32 512, 512
      %25 = vsyncadd [#allocation3], %s24
      %s26 = sshll.u32 [#allocation2], 4
      %s27 = int_to_ptr.vmem [resolvable:$true] %s26
      %32 = dma.hbm_to_vmem [thread:$0]  %s3, 512, %s27, [#allocation3], 128, 128, 8
    $region17: #{tpu_custom_call.1} parent=1 // pred_fallthru
      _
    // Predicated region
    $region18: #{tpu_custom_call.1} parent=1 // pred_check
      _
    $region19: #{tpu_custom_call.1} parent=1 // pred_check_branch
      %34 = sbr.rel (0) target = $region21
    $region20: #{tpu_custom_call.1} parent=1 // pred_region
      _
    $region21: #{tpu_custom_call.1} parent=1 // pred_fallthru
      _
    // Predicated region
    $region22: #{tpu_custom_call.1} parent=1 // pred_check
      _
    $region23: #{tpu_custom_call.1} parent=1 // pred_check_branch
      %36 = sbr.rel (0) target = $region25
    $region24: #{tpu_custom_call.1} parent=1 // pred_region
      %s38 = ssub.s32 512, 512
      %39 = vsyncadd [#allocation6], %s38
      %s40 = sshll.u32 [#allocation5], 4
      %s41 = int_to_ptr.vmem [resolvable:$true] %s40
      %46 = dma.hbm_to_vmem [thread:$0]  %s5, 512, %s41, [#allocation6], 128, 128, 8
    $region25: #{tpu_custom_call.1} parent=1 // pred_fallthru
      _
    // Predicated region
    $region26: #{tpu_custom_call.1} parent=1 // pred_check
      _
    $region27: #{tpu_custom_call.1} parent=1 // pred_check_branch
      %48 = sbr.rel (0) target = $region29
    $region28: #{tpu_custom_call.1} parent=1 // pred_region
      _
    $region29: #{tpu_custom_call.1} parent=1 // pred_fallthru
      _
    // Predicated region
    $region30: #{tpu_custom_call.1} parent=1 // pred_check
      _
    $region31: #{tpu_custom_call.1} parent=1 // pred_check_branch
      %50 = sbr.rel (0) target = $region33
    $region32: #{tpu_custom_call.1} parent=1 // pred_region
      %51 = dma.done [#allocation3], 512
    $region33: #{tpu_custom_call.1} parent=1 // pred_fallthru
      _
    // Predicated region
    $region34: #{tpu_custom_call.1} parent=1 // pred_check
      _
    $region35: #{tpu_custom_call.1} parent=1 // pred_check_branch
      %53 = sbr.rel (0) target = $region37
    $region36: #{tpu_custom_call.1} parent=1 // pred_region
      %54 = dma.done [#allocation6], 512
    $region37: #{tpu_custom_call.1} parent=1 // pred_fallthru
      _
    %v55 = vld [vmem:[%s1] sm:$0xff]
    %v56 = vld [vmem:[%s0] sm:$0xff]
    %v57 = vld [vmem:[%s2] sm:$0x1]
    %vm58 = vcmp.eq.s32.totalorder %v56, 0
    %v59 = vsel %vm58, 1, 0
    %60 = vset.pattern.permute.xlu0 0
    %61 = vperm.xlu0 %60, %v59
    %v62 = vpop.permute.xlu0 %61
    %vm63 = vcmp.eq.s32.totalorder %v62, 1
    %v64 = vlaneseq
    %v65 = vshrl.u32 %v64, 7
    %v66 = vsub.s32 0, %v65
    %v67 = vrot.slane %v57, %v66
    %v68 = vsel %vm63, %v67, 0.0
    %v69 = vadd.f32 %v68, 0.0
    %v70 = vld [vmem:[%s2 + $0x1] sm:$0x1]
    %vm71 = vcmp.eq.s32.totalorder %v56, 1
    %v72 = vsel %vm71, 1, 0
    %73 = vset.pattern.permute.xlu0 0
    %74 = vperm.xlu0 %73, %v72
    %v75 = vpop.permute.xlu0 %74
    %vm76 = vcmp.eq.s32.totalorder %v75, 1
    %v77 = vlaneseq
    %v78 = vshrl.u32 %v77, 7
    %v79 = vsub.s32 0, %v78
    %v80 = vrot.slane %v70, %v79
    %v81 = vsel %vm76, %v80, 0.0
    %v82 = vadd.f32 %v69, %v81
    %v83 = vld [vmem:[%s2 + $0x2] sm:$0x1]
    %vm84 = vcmp.eq.s32.totalorder %v56, 2
    %v85 = vsel %vm84, 1, 0
    %86 = vset.pattern.permute.xlu0 0
    %87 = vperm.xlu0 %86, %v85
    %v88 = vpop.permute.xlu0 %87
    %vm89 = vcmp.eq.s32.totalorder %v88, 1
    %v90 = vlaneseq
    %v91 = vshrl.u32 %v90, 7
    %v92 = vsub.s32 0, %v91
    %v93 = vrot.slane %v83, %v92
    %v94 = vsel %vm89, %v93, 0.0
    %v95 = vadd.f32 %v82, %v94
    %v96 = vld [vmem:[%s2 + $0x3] sm:$0x1]
    %vm97 = vcmp.eq.s32.totalorder %v56, 3
    %v98 = vsel %vm97, 1, 0
    %99 = vset.pattern.permute.xlu0 0
    %100 = vperm.xlu0 %99, %v98
    %v101 = vpop.permute.xlu0 %100
    %vm102 = vcmp.eq.s32.totalorder %v101, 1
    %v103 = vlaneseq
    %v104 = vshrl.u32 %v103, 7
    %v105 = vsub.s32 0, %v104
    %v106 = vrot.slane %v96, %v105
    %v107 = vsel %vm102, %v106, 0.0
    %v108 = vadd.f32 %v95, %v107
    %v109 = vld [vmem:[%s2 + $0x4] sm:$0x1]
    %vm110 = vcmp.eq.s32.totalorder %v56, 4
    %v111 = vsel %vm110, 1, 0
    %112 = vset.pattern.permute.xlu0 0
    %113 = vperm.xlu0 %112, %v111
    %v114 = vpop.permute.xlu0 %113
    %vm115 = vcmp.eq.s32.totalorder %v114, 1
    %v116 = vlaneseq
    %v117 = vshrl.u32 %v116, 7
    %v118 = vsub.s32 0, %v117
    %v119 = vrot.slane %v109, %v118
    %v120 = vsel %vm115, %v119, 0.0
    %v121 = vadd.f32 %v108, %v120
    %v122 = vld [vmem:[%s2 + $0x5] sm:$0x1]
    %vm123 = vcmp.eq.s32.totalorder %v56, 5
    %v124 = vsel %vm123, 1, 0
    %125 = vset.pattern.permute.xlu0 0
    %126 = vperm.xlu0 %125, %v124
    %v127 = vpop.permute.xlu0 %126
    %vm128 = vcmp.eq.s32.totalorder %v127, 1
    %v129 = vlaneseq
    %v130 = vshrl.u32 %v129, 7
    %v131 = vsub.s32 0, %v130
    %v132 = vrot.slane %v122, %v131
    %v133 = vsel %vm128, %v132, 0.0
    %v134 = vadd.f32 %v121, %v133
    %vm135 = vcmask 261120
    %v136 = vsel %vm135, %v55, 0.0
    %137 = vadd.xlane.f32.xlu0 %v136
    %v138 = vpop.xlane.xlu0 %137
    %v139 = vrcp.pop 32.0
    %v140 = vmul.f32 %v138, %v139
    %v141 = vsub.f32 %v55, %v140
    %v142 = vmul.f32 %v141, %v141
    %v143 = vsel %vm135, %v142, 0.0
    %144 = vadd.xlane.f32.xlu0 %v143
    %v145 = vpop.xlane.xlu0 %144
    %v146 = vmul.f32 %v145, %v139
    %v147 = vadd.f32 %v146, 1e-06
    %v148 = vrsqrt.pop %v147
    %v149 = vmul.f32 %v141, %v148
    %v150 = vmul.f32 %v149, %v134
    %152 = vrot.lane.b32.xlu0 %v134, 96
    %v153 = vpop.permute.xlu0 %152
    %v155 = vadd.f32 %v150, %v153
    %v156 = vld [vmem:[#allocation2] sm:$0xff]
    %v157 = vld [vmem:[#allocation2 + $0x8] sm:$0xff]
    %v158 = vld [vmem:[#allocation2 + $0x10] sm:$0xff]
    %v159 = vld [vmem:[#allocation2 + $0x18] sm:$0xff]
    %v160 = vld [vmem:[%s4] sm:$0x1]
    %v162 = vlaneseq
    %v163 = vshrl.u32 %v162, 7
    %v164 = vsub.s32 0, %v163
    %v165 = vrot.slane %v160, %v164
    %v168 = vsel %vm135, %v155, 0
    %170 = vmatprep.subr.mxu0 0.0
    %171 = vmatpush1.msra.mxu0 %v156
    %172 = vmatprep.subr.mxu0 0.0
    %173 = vmatpush1.msra.mxu0 %v157
    %174 = vmatprep.subr.mxu0 0.0
    %175 = vmatpush1.msra.mxu0 %v158
    %176 = vmatprep.subr.mxu0 0.0
    %177 = vmatpush1.msra.mxu0 %v159
    %178 = vmatprep.subr.mxu0 0.0
    %179 = vmatpush1.msra.mxu0 0.0
    %180 = vmatprep.subr.mxu0 0.0
    %181 = vmatpush1.msra.mxu0 0.0
    %182 = vmatprep.subr.mxu0 0.0
    %183 = vmatpush1.msra.mxu0 0.0
    %184 = vmatprep.subr.mxu0 0.0
    %185 = vmatpush1.msra.mxu0 0.0
    %186 = vmatprep.subr.mxu0 0.0
    %187 = vmatpush1.msra.mxu0 0.0
    %188 = vmatprep.subr.mxu0 0.0
    %189 = vmatpush1.msra.mxu0 0.0
    %190 = vmatprep.subr.mxu0 0.0
    %191 = vmatpush1.msra.mxu0 0.0
    %192 = vmatprep.subr.mxu0 0.0
    %193 = vmatpush1.msra.mxu0 0.0
    %194 = vmatprep.subr.mxu0 0.0
    %195 = vmatpush1.msra.mxu0 0.0
    %196 = vmatprep.subr.mxu0 0.0
    %197 = vmatpush1.msra.mxu0 0.0
    %198 = vmatprep.subr.mxu0 0.0
    %199 = vmatpush1.msra.mxu0 0.0
    %200 = vmatprep.subr.mxu0 0.0
    %201 = vmatpush1.msra.mxu0 0.0
    %202 = vmatprep.subr.mxu0 0.0
    %203 = vmatpush1.msra.mxu0 0.0
    %204 = vmatprep.subr.mxu0 0.0
    %205 = vmatpush1.msra.mxu0 0.0
    %206 = vmatprep.subr.mxu0 0.0
    %207 = vmatpush1.msra.mxu0 0.0
    %208 = vmatprep.subr.mxu0 0.0
    %209 = vmatpush1.msra.mxu0 0.0
    %210 = vmatprep.subr.mxu0 0.0
    %211 = vmatpush1.msra.mxu0 0.0
    %212 = vmatprep.subr.mxu0 0.0
    %213 = vmatpush1.msra.mxu0 0.0
    %214 = vmatprep.subr.mxu0 0.0
    %215 = vmatpush1.msra.mxu0 0.0
    %216 = vmatprep.subr.mxu0 0.0
    %217 = vmatpush1.msra.mxu0 0.0
    %218 = vmatprep.subr.mxu0 0.0
    %219 = vmatpush1.msra.mxu0 0.0
    %220 = vmatprep.subr.mxu0 0.0
    %221 = vmatpush1.msra.mxu0 0.0
    %222 = vmatprep.subr.mxu0 0.0
    %223 = vmatpush1.msra.mxu0 0.0
    %224 = vmatprep.subr.mxu0 0.0
    %225 = vmatpush1.msra.mxu0 0.0
    %226 = vmatprep.subr.mxu0 0.0
    %227 = vmatpush1.msra.mxu0 0.0
    %228 = vmatprep.subr.mxu0 0.0
    %229 = vmatpush1.msra.mxu0 0.0
    %230 = vmatprep.subr.mxu0 0.0
    %231 = vmatpush1.msra.mxu0 0.0
    %232 = vmatprep.subr.mxu0 0.0
    %233 = vmatpush1.msra.mxu0 0.0
    %234 = vmatprep.mubr.f32.mxu0 0.0
    %235 = vmatmul.mubr.f32.gmra.mrb[0].mxu0 %v168
    %v236 = vpop.f32.mrb[0].mxu0
    %v237 = vadd.f32 %v165, %v236
    %v238 = vpop.f32.mrb[0].mxu0
    %239 = vdwg.mxu0
    %vm240 = vcmp.ge.f32.partialorder %v237, 0.0
    %v241 = vmul.f32 %v237, 0.01
    %v242 = vsel %vm240, %v237, %v241
    %v243 = vld [vmem:[#allocation5] sm:$0xff]
    %v244 = vld [vmem:[#allocation5 + $0x8] sm:$0xff]
    %v245 = vld [vmem:[#allocation5 + $0x10] sm:$0xff]
    %v246 = vld [vmem:[#allocation5 + $0x18] sm:$0xff]
    %v247 = vld [vmem:[%s6] sm:$0x1]
    %v249 = vlaneseq
    %v250 = vshrl.u32 %v249, 7
    %v251 = vsub.s32 0, %v250
    %v252 = vrot.slane %v247, %v251
    %v255 = vsel %vm135, %v242, 0
    %257 = vmatprep.subr.mxu0 0.0
    %258 = vmatpush1.msra.mxu0 %v243
    %259 = vmatprep.subr.mxu0 0.0
    %260 = vmatpush1.msra.mxu0 %v244
    %261 = vmatprep.subr.mxu0 0.0
    %262 = vmatpush1.msra.mxu0 %v245
    %263 = vmatprep.subr.mxu0 0.0
    %264 = vmatpush1.msra.mxu0 %v246
    %265 = vmatprep.subr.mxu0 0.0
    %266 = vmatpush1.msra.mxu0 0.0
    %267 = vmatprep.subr.mxu0 0.0
    %268 = vmatpush1.msra.mxu0 0.0
    %269 = vmatprep.subr.mxu0 0.0
    %270 = vmatpush1.msra.mxu0 0.0
    %271 = vmatprep.subr.mxu0 0.0
    %272 = vmatpush1.msra.mxu0 0.0
    %273 = vmatprep.subr.mxu0 0.0
    %274 = vmatpush1.msra.mxu0 0.0
    %275 = vmatprep.subr.mxu0 0.0
    %276 = vmatpush1.msra.mxu0 0.0
    %277 = vmatprep.subr.mxu0 0.0
    %278 = vmatpush1.msra.mxu0 0.0
    %279 = vmatprep.subr.mxu0 0.0
    %280 = vmatpush1.msra.mxu0 0.0
    %281 = vmatprep.subr.mxu0 0.0
    %282 = vmatpush1.msra.mxu0 0.0
    %283 = vmatprep.subr.mxu0 0.0
    %284 = vmatpush1.msra.mxu0 0.0
    %285 = vmatprep.subr.mxu0 0.0
    %286 = vmatpush1.msra.mxu0 0.0
    %287 = vmatprep.subr.mxu0 0.0
    %288 = vmatpush1.msra.mxu0 0.0
    %289 = vmatprep.subr.mxu0 0.0
    %290 = vmatpush1.msra.mxu0 0.0
    %291 = vmatprep.subr.mxu0 0.0
    %292 = vmatpush1.msra.mxu0 0.0
    %293 = vmatprep.subr.mxu0 0.0
    %294 = vmatpush1.msra.mxu0 0.0
    %295 = vmatprep.subr.mxu0 0.0
    %296 = vmatpush1.msra.mxu0 0.0
    %297 = vmatprep.subr.mxu0 0.0
    %298 = vmatpush1.msra.mxu0 0.0
    %299 = vmatprep.subr.mxu0 0.0
    %300 = vmatpush1.msra.mxu0 0.0
    %301 = vmatprep.subr.mxu0 0.0
    %302 = vmatpush1.msra.mxu0 0.0
    %303 = vmatprep.subr.mxu0 0.0
    %304 = vmatpush1.msra.mxu0 0.0
    %305 = vmatprep.subr.mxu0 0.0
    %306 = vmatpush1.msra.mxu0 0.0
    %307 = vmatprep.subr.mxu0 0.0
    %308 = vmatpush1.msra.mxu0 0.0
    %309 = vmatprep.subr.mxu0 0.0
    %310 = vmatpush1.msra.mxu0 0.0
    %311 = vmatprep.subr.mxu0 0.0
    %312 = vmatpush1.msra.mxu0 0.0
    %313 = vmatprep.subr.mxu0 0.0
    %314 = vmatpush1.msra.mxu0 0.0
    %315 = vmatprep.subr.mxu0 0.0
    %316 = vmatpush1.msra.mxu0 0.0
    %317 = vmatprep.subr.mxu0 0.0
    %318 = vmatpush1.msra.mxu0 0.0
    %319 = vmatprep.subr.mxu0 0.0
    %320 = vmatpush1.msra.mxu0 0.0
    %321 = vmatprep.mubr.f32.mxu0 0.0
    %322 = vmatmul.mubr.f32.gmra.mrb[0].mxu0 %v255
    %v323 = vpop.f32.mrb[0].mxu0
    %v324 = vadd.f32 %v252, %v323
    %v325 = vpop.f32.mrb[0].mxu0
    %326 = vdwg.mxu0
    %327 = vset.pattern.permute.xlu0 96
    %328 = vperm.xlu0 %327, %v134
    %v329 = vpop.permute.xlu0 %328
    %v331 = vmul.f32 %v329, %v55
    %333 = vrot.lane.b32.xlu0 %v324, 64
    %v334 = vpop.permute.xlu0 %333
    %v336 = vmul.f32 %v134, %v334
    %338 = vrot.lane.b32.xlu0 %v336, 64
    %v339 = vpop.permute.xlu0 %338
    %v341 = vadd.f32 %v331, %v339
    %342 = vset.pattern.permute.xlu0 97
    %343 = vperm.xlu0 %342, %v134
    %v344 = vpop.permute.xlu0 %343
    %v346 = vadd.f32 %v341, %v344
    %347 = vst.msk [vmem:[#allocation7] sm:$0xff] %vm135, %v346
    // Predicated region
    $region38: #{tpu_custom_call.1} parent=1 // pred_check
      _
    $region39: #{tpu_custom_call.1} parent=1 // pred_check_branch
      %349 = sbr.rel (0) target = $region41
    $region40: #{tpu_custom_call.1} parent=1 // pred_region
      %s351 = ssub.s32 128, 128
      %352 = vsyncadd [#allocation4], %s351
      %s354 = sshll.u32 [#allocation7], 4
      %s355 = int_to_ptr.vmem [resolvable:$true] %s354
      %357 = dma.vmem_to_hbm [thread:$0]  %s355, 128, %s7, [#allocation4]
    $region41: #{tpu_custom_call.1} parent=1 // pred_fallthru
      _
    // Predicated region
    $region42: #{tpu_custom_call.1} parent=1 // pred_check
      _
    $region43: #{tpu_custom_call.1} parent=1 // pred_check_branch
      %359 = sbr.rel (0) target = $region45
    $region44: #{tpu_custom_call.1} parent=1 // pred_region
      %360 = dma.done [#allocation4], 128
    $region45: #{tpu_custom_call.1} parent=1 // pred_fallthru
      _
    %361 = vsyncpa [#allocation3], 1
    %362 = vsyncpa [#allocation6], 1
    %363 = vsyncpa [#allocation4], 1

</llo_original>
